<compile_context>
chip_gen: v5e
topology: v5e:2x2
jax: 0.10.0
libtpu: 0.0.40
codegen_flags: <defaults>
</compile_context>

<pallas_src>
import functools

import numpy as np
import jax
import jax.numpy as jnp
from jax import lax
from jax.experimental import pallas as pl
from jax.experimental.pallas import tpu as pltpu

# offsets of the "-1" (NMS) / "1" (hysteresis) tap relative to the center for
# the 8 kernels returned by get_canny_nms_kernel / get_hysteresis_kernel.
_OFFSETS = ((0, 1), (1, 1), (1, 0), (1, -1), (0, -1), (-1, -1), (-1, 0), (-1, 1))


def _conv1d_matrix(n, taps, mode):
    """(n, n) matrix M such that (M @ x) is the 1-D correlation of x with `taps`
    under `mode` padding ('reflect' or 'replicate')."""
    r = len(taps) // 2
    m = np.zeros((n, n), np.float64)
    for i in range(n):
        for t, w in enumerate(taps):
            src = i + t - r
            if mode == "reflect":          # torch 'reflect' (no edge repeat)
                if src < 0:
                    src = -src
                elif src >= n:
                    src = 2 * (n - 1) - src
            elif mode == "replicate":
                src = min(max(src, 0), n - 1)
            else:
                raise ValueError(mode)
            m[i, src] += w
    return m


def _edge_masks(h, w):
    """Hoisted +/-1 shift validity masks (roll path only): built ONCE per image.

    Keyed by the shift offset along each axis; combined with one AND per diagonal."""
    ri = lax.broadcasted_iota(jnp.int32, (h, w), 0)
    ci = lax.broadcasted_iota(jnp.int32, (h, w), 1)
    return {(1, 0): ri < h - 1, (-1, 0): ri >= 1,
            (0, 1): ci < w - 1, (0, -1): ci >= 1}


def _shift2d(x, di, dj, masks):
    """y[i, j] = x[i + di, j + dj], zero outside (== 3x3 conv tap, zero padding).

    Lane/sublane-native shapes (masks provided): XLU rotates (pltpu.roll) + hoisted
    edge masks.  Otherwise: slice+concat fallback (small images, e.g. 16x16)."""
    h, w = x.shape
    if masks is not None:
        y = x
        m = None
        if di != 0:
            y = pltpu.roll(y, (-di) % h, axis=0)
            m = masks[(di, 0)]
        if dj != 0:
            y = pltpu.roll(y, (-dj) % w, axis=1)
            mj = masks[(0, dj)]
            m = mj if m is None else jnp.logical_and(m, mj)
        return y if m is None else jnp.where(m, y, 0.0)
    # slice + concat fallback (small / non-native shapes).
    y = x
    if di > 0:
        y = jnp.concatenate([y[di:, :], jnp.zeros((di, w), y.dtype)], axis=0)
    elif di < 0:
        y = jnp.concatenate([jnp.zeros((-di, w), y.dtype), y[: h + di, :]], axis=0)
    if dj > 0:
        y = jnp.concatenate([y[:, dj:], jnp.zeros((h, dj), y.dtype)], axis=1)
    elif dj < 0:
        y = jnp.concatenate([jnp.zeros((h, -dj), y.dtype), y[:, : w + dj]], axis=1)
    return y


def _canny_kernel(x_ref, row_ref, col_ref, thr_ref, o_ref, e_scr, *,
                  num_ch, eps, hysteresis):
    # grayscale (kornia rgb_to_grayscale weights); other channel counts use ch 0
    # TODO(synk): for C not in {1, 3} the reference keeps a per-channel edge map.
    if num_ch == 3:
        gray = 0.299 * x_ref[0, 0] + 0.587 * x_ref[0, 1] + 0.114 * x_ref[0, 2]
    else:
        gray = x_ref[0, 0]

    h, w = gray.shape
    masks = _edge_masks(h, w) if (h % 8 == 0 and w % 128 == 0) else None

    def mm(a, b):
        # f32 MXU matmul.  Kept f32 (not bf16) so the magnitude feeding the exact
        # NMS '>' ties, the thresholds and the ==0.5/==1.0 hysteresis logic matches
        # the torch reference.
        return jnp.dot(a, b, preferred_element_type=jnp.float32)

    # Folded (Gaussian blur o normalized Sobel) separable operators (4 matmuls):
    #   gx = (R_smooth @ R_gauss) @ gray @ (C_deriv @ C_gauss)^T
    #   gy = (R_deriv  @ R_gauss) @ gray @ (C_smooth @ C_gauss)^T
    gx = mm(mm(row_ref[0], gray), col_ref[0])
    gy = mm(mm(row_ref[1], gray), col_ref[1])

    mag = jnp.sqrt(gx * gx + gy * gy + eps)

    # direction bin = round(atan2(gy, gx)/45deg) mod 8, via sign / tan(22.5deg)
    # comparisons (same binning incl. the half-to-even tie behaviour).
    t = 0.4142135623730951  # tan(22.5 deg)
    ax = jnp.abs(gx)
    ay = jnp.abs(gy)
    horiz = ay <= t * ax
    vert = ax <= t * ay
    diag_idx = jnp.where(gx > 0.0,
                         jnp.where(gy > 0.0, 1, 7),
                         jnp.where(gy > 0.0, 3, 5))
    pos_idx = jnp.where(horiz, jnp.where(gx >= 0.0, 0, 4),
                        jnp.where(vert, jnp.where(gy > 0.0, 2, 6), diag_idx))
    pos_idx = pos_idx.astype(jnp.int32)

    # Hoisted bin compares (each emitted once, reused for direction k and k ^ 4).
    eqs = [pos_idx == k for k in range(8)]

    # Non-maximum suppression, boolean accumulation.  The opposite direction of
    # bin k is k ^ 4, so one 8-way loop covers both channel gathers.
    pos_gt = jnp.zeros(mag.shape, jnp.bool_)
    neg_gt = jnp.zeros(mag.shape, jnp.bool_)
    for k, (di, dj) in enumerate(_OFFSETS):
        gt_k = mag > _shift2d(mag, di, dj, masks)   # == (mag - shifted_mag) > 0
        pos_gt = jnp.logical_or(pos_gt, jnp.logical_and(eqs[k], gt_k))
        neg_gt = jnp.logical_or(neg_gt, jnp.logical_and(eqs[k ^ 4], gt_k))
    mag_s = jnp.where(jnp.logical_and(pos_gt, neg_gt), mag, 0.0)

    # double thresholding (F.threshold keeps the value, zeroes otherwise)
    low_t = thr_ref[0]
    high_t = thr_ref[1]
    low = jnp.where(mag_s > low_t, mag_s, 0.0)
    high = jnp.where(mag_s > high_t, mag_s, 0.0)
    edges = low * 0.5 + high * 0.5

    if not hysteresis:
        o_ref[0, 0, :, :] = edges
        return

    # --- hysteresis: the whole data-dependent fixed-point loop runs in-kernel;
    # state lives in VMEM scratch, a single output store happens after the loop. ---
    e_scr[...] = edges

    def body(_):
        e = e_scr[...]
        weak = e == 0.5
        strong = jnp.where(e == 1.0, 1.0, 0.0)
        # "any 8-neighbour is strong" == 3x3 max dilation (separable; including the
        # centre tap is harmless because weak & strong are exclusive).
        rmax = jnp.maximum(jnp.maximum(_shift2d(strong, -1, 0, masks), strong),
                           _shift2d(strong, 1, 0, masks))
        nmax = jnp.maximum(jnp.maximum(_shift2d(rmax, 0, -1, masks), rmax),
                           _shift2d(rmax, 0, 1, masks))
        promote = jnp.where(jnp.logical_and(nmax > 0.5, weak), 1.0, 0.0)
        hm = promote + strong                      # torch: hysteresis_magnitude
        e_scr[...] = hm + jnp.where(jnp.logical_and(hm == 0.0, weak), 0.5, 0.0)
        # After the first (canonicalizing) iteration the only possible change is a
        # weak->strong promotion, so this converges to the same fixed point as the
        # reference's full |new - old| != 0 test (possibly one iteration earlier,
        # with an identical final hysteresis_magnitude).
        return (jnp.max(promote) > 0.0).astype(jnp.int32)

    # torch starts from edges_old = -1, so the loop always runs at least once.
    lax.while_loop(lambda c: c > 0, body, jnp.int32(1))

    # Reference returns the last hysteresis_magnitude; e_scr differs from it only at
    # the still-weak (== 0.5) pixels, which the reference zeroes.
    e = e_scr[...]
    o_ref[0, 0, :, :] = jnp.where(e == 0.5, 0.0, e)


def canny_pallas(x, low_threshold=0.1, high_threshold=0.4,
                 kernel_size=(5, 5), sigma=(1.0, 1.0),
                 hysteresis=True, eps=1e-6):
    x = x.astype(jnp.float32)
    B, C, H, W = x.shape

    # Thresholds use the ORIGINAL input's batch-global max (pre-grayscale), exactly as
    # the reference does; this reduce must precede any per-image work so it stays a
    # (cheap, fused-by-XLA) host-graph op feeding the SMEM scalar input.
    xmax = jnp.max(x)
    thr = jnp.stack([xmax * low_threshold, xmax * high_threshold]).astype(jnp.float32)

    ky, kx = kernel_size if isinstance(kernel_size, (tuple, list)) else (kernel_size,) * 2
    sy, sx = sigma if isinstance(sigma, (tuple, list)) else (sigma,) * 2

    def gauss_taps(k, s):
        d = np.arange(k, dtype=np.float64) - k // 2
        g = np.exp(-(d ** 2) / (2.0 * float(s) ** 2))
        return g / g.sum()

    smooth = np.array([1.0, 2.0, 1.0])
    deriv = np.array([-1.0, 0.0, 1.0]) / 8.0   # normalized Sobel factor

    # 1-D padded-correlation operator matrices (padding folded in).
    R_g = _conv1d_matrix(H, gauss_taps(ky, sy), "reflect")
    R_s = _conv1d_matrix(H, smooth, "replicate")
    R_d = _conv1d_matrix(H, deriv, "replicate")
    C_g = _conv1d_matrix(W, gauss_taps(kx, sx), "reflect")
    C_s = _conv1d_matrix(W, smooth, "replicate")
    C_d = _conv1d_matrix(W, deriv, "replicate")

    # Fold blur into Sobel: gx/gy need only 2 matmuls each inside the kernel.
    row_ops = np.stack([R_s @ R_g, R_d @ R_g]).astype(np.float32)          # (2,H,H)
    col_ops = np.stack([(C_d @ C_g).T, (C_s @ C_g).T]).astype(np.float32)  # (2,W,W)

    kernel = functools.partial(_canny_kernel, num_ch=C, eps=float(eps),
                               hysteresis=bool(hysteresis))

    # Scoped VMEM sized to the real working set (defaults are 16/32 MiB and are exceeded
    # for H,W >= ~384-512): input block + operator constants + output (each double
    # buffered), e_scr scratch, ~12 live HxW temporaries, 1.5x headroom.
    work_elems = (2 * C * H * W                  # input block (double-buffered)
                  + 2 * (2 * H * H + 2 * W * W)  # operator constants (double-buffered)
                  + 2 * H * W                    # output block (double-buffered)
                  + H * W                        # e_scr scratch
                  + 12 * H * W)                  # live f32/bool temporaries
    vmem_limit = int(min(max(work_elems * 4 * 3 // 2, 32 * 1024 * 1024),
                         128 * 1024 * 1024))

    return pl.pallas_call(
        kernel,
        out_shape=jax.ShapeDtypeStruct((B, 1, H, W), jnp.float32),
        grid=(B,),
        in_specs=[
            pl.BlockSpec((1, C, H, W), lambda b: (b, 0, 0, 0)),
            pl.BlockSpec((2, H, H), lambda b: (0, 0, 0)),
            pl.BlockSpec((2, W, W), lambda b: (0, 0, 0)),
            pl.BlockSpec(memory_space=pltpu.MemorySpace.SMEM),   # thresholds
        ],
        out_specs=pl.BlockSpec((1, 1, H, W), lambda b: (b, 0, 0, 0)),
        scratch_shapes=[pltpu.VMEM((H, W), jnp.float32)],
        compiler_params=pltpu.CompilerParams(
            dimension_semantics=("parallel",),   # batch steps are independent
            vmem_limit_bytes=vmem_limit),
    )(x, jnp.asarray(row_ops), jnp.asarray(col_ops), thr)


class CannyPallas:
    """Pallas counterpart of the torch `Canny` module (same defaults)."""

    def __init__(self, low_threshold=0.1, high_threshold=0.4,
                 kernel_size=(5, 5), sigma=(1, 1), hysteresis=True, eps=1e-6):
        self.low_threshold = low_threshold
        self.high_threshold = high_threshold
        self.kernel_size = kernel_size
        self.sigma = sigma
        self.hysteresis = hysteresis
        self.eps = eps

    def __call__(self, x):
        return canny_pallas(x, self.low_threshold, self.high_threshold,
                            self.kernel_size, self.sigma, self.hysteresis, self.eps)


if __name__ == "__main__":
    key = jax.random.PRNGKey(0)
    x = jax.random.uniform(key, (2, 3, 16, 16), dtype=jnp.float32)  # B,C,H,W

    model = CannyPallas()
    edges = jax.jit(model.__call__)(x)
    edges = jax.block_until_ready(edges)

    assert edges.shape == (2, 1, 16, 16), edges.shape
    assert edges.dtype == jnp.float32
    assert bool(jnp.all(jnp.isfinite(edges)))
    print("KERNEL_OK")
</pallas_src>

<mosaic_0001>
module attributes {stable_mosaic.version = 11 : i64} {
  func.func @_canny_kernel(%arg0: i32, %arg1: memref<1x3x16x16xf32, #tpu.memory_space<vmem>>, %arg2: memref<2x16x16xf32, #tpu.memory_space<vmem>>, %arg3: memref<2x16x16xf32, #tpu.memory_space<vmem>>, %arg4: memref<2xf32, #tpu.memory_space<smem>>, %arg5: memref<1x1x16x16xf32, #tpu.memory_space<vmem>>, %arg6: memref<16x16xf32, #tpu.memory_space<vmem>>) attributes {dimension_semantics = [#tpu.dimension_semantics<parallel>], iteration_bounds = array<i64: 2>, scalar_prefetch = 0 : i64, scratch_operands = 1 : i64, tpu.core_type = #tpu.core_type<tc>, window_params = [{transform_indices = @transform_0, window_bounds = array<i64: 1, 3, 16, 16>}, {pipeline_mode = #tpu.pipeline_mode<synchronous>, transform_indices = @transform_1, window_bounds = array<i64: 2, 16, 16>}, {pipeline_mode = #tpu.pipeline_mode<synchronous>, transform_indices = @transform_2, window_bounds = array<i64: 2, 16, 16>}, {transform_indices = @transform_3, window_bounds = array<i64: 2>}, {transform_indices = @transform_4, window_bounds = array<i64: 1, 1, 16, 16>}]} {
    %c0 = arith.constant 0 : index
    %c0_0 = arith.constant 0 : index
    %c0_1 = arith.constant 0 : index
    %c0_2 = arith.constant 0 : index
    %0 = vector.load %arg1[%c0, %c0_0, %c0_1, %c0_2] : memref<1x3x16x16xf32, #tpu.memory_space<vmem>>, vector<1x1x16x16xf32>
    %1 = vector.shape_cast %0 : vector<1x1x16x16xf32> to vector<16x16xf32>
    %cst = arith.constant 2.990000e-01 : f32
    %2 = vector.broadcast %cst : f32 to vector<16x16xf32>
    %3 = arith.mulf %2, %1 : vector<16x16xf32>
    %c0_3 = arith.constant 0 : index
    %c1 = arith.constant 1 : index
    %c0_4 = arith.constant 0 : index
    %c0_5 = arith.constant 0 : index
    %4 = vector.load %arg1[%c0_3, %c1, %c0_4, %c0_5] : memref<1x3x16x16xf32, #tpu.memory_space<vmem>>, vector<1x1x16x16xf32>
    %5 = vector.shape_cast %4 : vector<1x1x16x16xf32> to vector<16x16xf32>
    %cst_6 = arith.constant 5.870000e-01 : f32
    %6 = vector.broadcast %cst_6 : f32 to vector<16x16xf32>
    %7 = arith.mulf %6, %5 : vector<16x16xf32>
    %8 = arith.addf %3, %7 : vector<16x16xf32>
    %c0_7 = arith.constant 0 : index
    %c2 = arith.constant 2 : index
    %c0_8 = arith.constant 0 : index
    %c0_9 = arith.constant 0 : index
    %9 = vector.load %arg1[%c0_7, %c2, %c0_8, %c0_9] : memref<1x3x16x16xf32, #tpu.memory_space<vmem>>, vector<1x1x16x16xf32>
    %10 = vector.shape_cast %9 : vector<1x1x16x16xf32> to vector<16x16xf32>
    %cst_10 = arith.constant 1.140000e-01 : f32
    %11 = vector.broadcast %cst_10 : f32 to vector<16x16xf32>
    %12 = arith.mulf %11, %10 : vector<16x16xf32>
    %13 = arith.addf %8, %12 : vector<16x16xf32>
    %c0_11 = arith.constant 0 : index
    %c0_12 = arith.constant 0 : index
    %c0_13 = arith.constant 0 : index
    %14 = vector.load %arg2[%c0_11, %c0_12, %c0_13] : memref<2x16x16xf32, #tpu.memory_space<vmem>>, vector<1x16x16xf32>
    %15 = vector.shape_cast %14 : vector<1x16x16xf32> to vector<16x16xf32>
    %cst_14 = arith.constant dense<0.000000e+00> : vector<16x16xf32>
    %16 = tpu.matmul %15, %13, %cst_14 {dimension_numbers = #tpu.dot_dimension_numbers<[1], [0], [0], [1], [0, 0, 1, 1], [], []>} : vector<16x16xf32>, vector<16x16xf32>, vector<16x16xf32> -> vector<16x16xf32>
    %c0_15 = arith.constant 0 : index
    %c0_16 = arith.constant 0 : index
    %c0_17 = arith.constant 0 : index
    %17 = vector.load %arg3[%c0_15, %c0_16, %c0_17] : memref<2x16x16xf32, #tpu.memory_space<vmem>>, vector<1x16x16xf32>
    %18 = vector.shape_cast %17 : vector<1x16x16xf32> to vector<16x16xf32>
    %cst_18 = arith.constant dense<0.000000e+00> : vector<16x16xf32>
    %19 = tpu.matmul %16, %18, %cst_18 {dimension_numbers = #tpu.dot_dimension_numbers<[1], [0], [0], [1], [0, 0, 1, 1], [], []>} : vector<16x16xf32>, vector<16x16xf32>, vector<16x16xf32> -> vector<16x16xf32>
    %c1_19 = arith.constant 1 : index
    %c0_20 = arith.constant 0 : index
    %c0_21 = arith.constant 0 : index
    %20 = vector.load %arg2[%c1_19, %c0_20, %c0_21] : memref<2x16x16xf32, #tpu.memory_space<vmem>>, vector<1x16x16xf32>
    %21 = vector.shape_cast %20 : vector<1x16x16xf32> to vector<16x16xf32>
    %cst_22 = arith.constant dense<0.000000e+00> : vector<16x16xf32>
    %22 = tpu.matmul %21, %13, %cst_22 {dimension_numbers = #tpu.dot_dimension_numbers<[1], [0], [0], [1], [0, 0, 1, 1], [], []>} : vector<16x16xf32>, vector<16x16xf32>, vector<16x16xf32> -> vector<16x16xf32>
    %c1_23 = arith.constant 1 : index
    %c0_24 = arith.constant 0 : index
    %c0_25 = arith.constant 0 : index
    %23 = vector.load %arg3[%c1_23, %c0_24, %c0_25] : memref<2x16x16xf32, #tpu.memory_space<vmem>>, vector<1x16x16xf32>
    %24 = vector.shape_cast %23 : vector<1x16x16xf32> to vector<16x16xf32>
    %cst_26 = arith.constant dense<0.000000e+00> : vector<16x16xf32>
    %25 = tpu.matmul %22, %24, %cst_26 {dimension_numbers = #tpu.dot_dimension_numbers<[1], [0], [0], [1], [0, 0, 1, 1], [], []>} : vector<16x16xf32>, vector<16x16xf32>, vector<16x16xf32> -> vector<16x16xf32>
    %26 = arith.mulf %19, %19 : vector<16x16xf32>
    %27 = arith.mulf %25, %25 : vector<16x16xf32>
    %28 = arith.addf %26, %27 : vector<16x16xf32>
    %cst_27 = arith.constant 9.99999997E-7 : f32
    %29 = vector.broadcast %cst_27 : f32 to vector<16x16xf32>
    %30 = arith.addf %28, %29 : vector<16x16xf32>
    %31 = math.sqrt %30 : vector<16x16xf32>
    %32 = math.absf %19 : vector<16x16xf32>
    %33 = math.absf %25 : vector<16x16xf32>
    %cst_28 = arith.constant 0.414213568 : f32
    %34 = vector.broadcast %cst_28 : f32 to vector<16x16xf32>
    %35 = arith.mulf %34, %32 : vector<16x16xf32>
    %36 = arith.cmpf ole, %33, %35 : vector<16x16xf32>
    %cst_29 = arith.constant 0.414213568 : f32
    %37 = vector.broadcast %cst_29 : f32 to vector<16x16xf32>
    %38 = arith.mulf %37, %33 : vector<16x16xf32>
    %39 = arith.cmpf ole, %32, %38 : vector<16x16xf32>
    %cst_30 = arith.constant 0.000000e+00 : f32
    %40 = vector.broadcast %cst_30 : f32 to vector<16x16xf32>
    %41 = arith.cmpf ogt, %19, %40 : vector<16x16xf32>
    %cst_31 = arith.constant 0.000000e+00 : f32
    %42 = vector.broadcast %cst_31 : f32 to vector<16x16xf32>
    %43 = arith.cmpf ogt, %25, %42 : vector<16x16xf32>
    %c1_i32 = arith.constant 1 : i32
    %c7_i32 = arith.constant 7 : i32
    %44 = vector.broadcast %c1_i32 : i32 to vector<16x16xi32>
    %45 = vector.broadcast %c7_i32 : i32 to vector<16x16xi32>
    %46 = arith.select %43, %44, %45 : vector<16x16xi1>, vector<16x16xi32>
    %cst_32 = arith.constant 0.000000e+00 : f32
    %47 = vector.broadcast %cst_32 : f32 to vector<16x16xf32>
    %48 = arith.cmpf ogt, %25, %47 : vector<16x16xf32>
    %c3_i32 = arith.constant 3 : i32
    %c5_i32 = arith.constant 5 : i32
    %49 = vector.broadcast %c3_i32 : i32 to vector<16x16xi32>
    %50 = vector.broadcast %c5_i32 : i32 to vector<16x16xi32>
    %51 = arith.select %48, %49, %50 : vector<16x16xi1>, vector<16x16xi32>
    %52 = arith.select %41, %46, %51 : vector<16x16xi1>, vector<16x16xi32>
    %cst_33 = arith.constant 0.000000e+00 : f32
    %53 = vector.broadcast %cst_33 : f32 to vector<16x16xf32>
    %54 = arith.cmpf oge, %19, %53 : vector<16x16xf32>
    %c0_i32 = arith.constant 0 : i32
    %c4_i32 = arith.constant 4 : i32
    %55 = vector.broadcast %c0_i32 : i32 to vector<16x16xi32>
    %56 = vector.broadcast %c4_i32 : i32 to vector<16x16xi32>
    %57 = arith.select %54, %55, %56 : vector<16x16xi1>, vector<16x16xi32>
    %cst_34 = arith.constant 0.000000e+00 : f32
    %58 = vector.broadcast %cst_34 : f32 to vector<16x16xf32>
    %59 = arith.cmpf ogt, %25, %58 : vector<16x16xf32>
    %c2_i32 = arith.constant 2 : i32
    %c6_i32 = arith.constant 6 : i32
    %60 = vector.broadcast %c2_i32 : i32 to vector<16x16xi32>
    %61 = vector.broadcast %c6_i32 : i32 to vector<16x16xi32>
    %62 = arith.select %59, %60, %61 : vector<16x16xi1>, vector<16x16xi32>
    %63 = arith.select %39, %62, %52 : vector<16x16xi1>, vector<16x16xi32>
    %64 = arith.select %36, %57, %63 : vector<16x16xi1>, vector<16x16xi32>
    %c0_i32_35 = arith.constant 0 : i32
    %65 = vector.broadcast %c0_i32_35 : i32 to vector<16x16xi32>
    %66 = arith.cmpi eq, %64, %65 : vector<16x16xi32>
    %c1_i32_36 = arith.constant 1 : i32
    %67 = vector.broadcast %c1_i32_36 : i32 to vector<16x16xi32>
    %68 = arith.cmpi eq, %64, %67 : vector<16x16xi32>
    %c2_i32_37 = arith.constant 2 : i32
    %69 = vector.broadcast %c2_i32_37 : i32 to vector<16x16xi32>
    %70 = arith.cmpi eq, %64, %69 : vector<16x16xi32>
    %c3_i32_38 = arith.constant 3 : i32
    %71 = vector.broadcast %c3_i32_38 : i32 to vector<16x16xi32>
    %72 = arith.cmpi eq, %64, %71 : vector<16x16xi32>
    %c4_i32_39 = arith.constant 4 : i32
    %73 = vector.broadcast %c4_i32_39 : i32 to vector<16x16xi32>
    %74 = arith.cmpi eq, %64, %73 : vector<16x16xi32>
    %c5_i32_40 = arith.constant 5 : i32
    %75 = vector.broadcast %c5_i32_40 : i32 to vector<16x16xi32>
    %76 = arith.cmpi eq, %64, %75 : vector<16x16xi32>
    %c6_i32_41 = arith.constant 6 : i32
    %77 = vector.broadcast %c6_i32_41 : i32 to vector<16x16xi32>
    %78 = arith.cmpi eq, %64, %77 : vector<16x16xi32>
    %c7_i32_42 = arith.constant 7 : i32
    %79 = vector.broadcast %c7_i32_42 : i32 to vector<16x16xi32>
    %80 = arith.cmpi eq, %64, %79 : vector<16x16xi32>
    %false = arith.constant false
    %81 = vector.broadcast %false : i1 to vector<16x16xi1>
    %false_43 = arith.constant false
    %82 = vector.broadcast %false_43 : i1 to vector<16x16xi1>
    %83 = vector.extract_strided_slice %31 {offsets = [0, 1], sizes = [16, 15], strides = [1, 1]} : vector<16x16xf32> to vector<16x15xf32>
    %cst_44 = arith.constant 0.000000e+00 : f32
    %84 = vector.broadcast %cst_44 : f32 to vector<16x1xf32>
    %85 = tpu.concatenate %83, %84 in 1 : vector<16x15xf32>, vector<16x1xf32> -> vector<16x16xf32>
    %86 = arith.cmpf ogt, %31, %85 : vector<16x16xf32>
    %87 = arith.andi %66, %86 : vector<16x16xi1>
    %88 = arith.ori %81, %87 : vector<16x16xi1>
    %89 = arith.andi %74, %86 : vector<16x16xi1>
    %90 = arith.ori %82, %89 : vector<16x16xi1>
    %91 = vector.extract_strided_slice %31 {offsets = [1, 0], sizes = [15, 16], strides = [1, 1]} : vector<16x16xf32> to vector<15x16xf32>
    %cst_45 = arith.constant 0.000000e+00 : f32
    %92 = vector.broadcast %cst_45 : f32 to vector<1x16xf32>
    %93 = tpu.concatenate %91, %92 in 0 : vector<15x16xf32>, vector<1x16xf32> -> vector<16x16xf32>
    %94 = vector.extract_strided_slice %93 {offsets = [0, 1], sizes = [16, 15], strides = [1, 1]} : vector<16x16xf32> to vector<16x15xf32>
    %cst_46 = arith.constant 0.000000e+00 : f32
    %95 = vector.broadcast %cst_46 : f32 to vector<16x1xf32>
    %96 = tpu.concatenate %94, %95 in 1 : vector<16x15xf32>, vector<16x1xf32> -> vector<16x16xf32>
    %97 = arith.cmpf ogt, %31, %96 : vector<16x16xf32>
    %98 = arith.andi %68, %97 : vector<16x16xi1>
    %99 = arith.ori %88, %98 : vector<16x16xi1>
    %100 = arith.andi %76, %97 : vector<16x16xi1>
    %101 = arith.ori %90, %100 : vector<16x16xi1>
    %102 = vector.extract_strided_slice %31 {offsets = [1, 0], sizes = [15, 16], strides = [1, 1]} : vector<16x16xf32> to vector<15x16xf32>
    %cst_47 = arith.constant 0.000000e+00 : f32
    %103 = vector.broadcast %cst_47 : f32 to vector<1x16xf32>
    %104 = tpu.concatenate %102, %103 in 0 : vector<15x16xf32>, vector<1x16xf32> -> vector<16x16xf32>
    %105 = arith.cmpf ogt, %31, %104 : vector<16x16xf32>
    %106 = arith.andi %70, %105 : vector<16x16xi1>
    %107 = arith.ori %99, %106 : vector<16x16xi1>
    %108 = arith.andi %78, %105 : vector<16x16xi1>
    %109 = arith.ori %101, %108 : vector<16x16xi1>
    %110 = vector.extract_strided_slice %31 {offsets = [1, 0], sizes = [15, 16], strides = [1, 1]} : vector<16x16xf32> to vector<15x16xf32>
    %cst_48 = arith.constant 0.000000e+00 : f32
    %111 = vector.broadcast %cst_48 : f32 to vector<1x16xf32>
    %112 = tpu.concatenate %110, %111 in 0 : vector<15x16xf32>, vector<1x16xf32> -> vector<16x16xf32>
    %cst_49 = arith.constant 0.000000e+00 : f32
    %113 = vector.broadcast %cst_49 : f32 to vector<16x1xf32>
    %114 = vector.extract_strided_slice %112 {offsets = [0, 0], sizes = [16, 15], strides = [1, 1]} : vector<16x16xf32> to vector<16x15xf32>
    %115 = tpu.concatenate %113, %114 in 1 : vector<16x1xf32>, vector<16x15xf32> -> vector<16x16xf32>
    %116 = arith.cmpf ogt, %31, %115 : vector<16x16xf32>
    %117 = arith.andi %72, %116 : vector<16x16xi1>
    %118 = arith.ori %107, %117 : vector<16x16xi1>
    %119 = arith.andi %80, %116 : vector<16x16xi1>
    %120 = arith.ori %109, %119 : vector<16x16xi1>
    %cst_50 = arith.constant 0.000000e+00 : f32
    %121 = vector.broadcast %cst_50 : f32 to vector<16x1xf32>
    %122 = vector.extract_strided_slice %31 {offsets = [0, 0], sizes = [16, 15], strides = [1, 1]} : vector<16x16xf32> to vector<16x15xf32>
    %123 = tpu.concatenate %121, %122 in 1 : vector<16x1xf32>, vector<16x15xf32> -> vector<16x16xf32>
    %124 = arith.cmpf ogt, %31, %123 : vector<16x16xf32>
    %125 = arith.andi %74, %124 : vector<16x16xi1>
    %126 = arith.ori %118, %125 : vector<16x16xi1>
    %127 = arith.andi %66, %124 : vector<16x16xi1>
    %128 = arith.ori %120, %127 : vector<16x16xi1>
    %cst_51 = arith.constant 0.000000e+00 : f32
    %129 = vector.broadcast %cst_51 : f32 to vector<1x16xf32>
    %130 = vector.extract_strided_slice %31 {offsets = [0, 0], sizes = [15, 16], strides = [1, 1]} : vector<16x16xf32> to vector<15x16xf32>
    %131 = tpu.concatenate %129, %130 in 0 : vector<1x16xf32>, vector<15x16xf32> -> vector<16x16xf32>
    %cst_52 = arith.constant 0.000000e+00 : f32
    %132 = vector.broadcast %cst_52 : f32 to vector<16x1xf32>
    %133 = vector.extract_strided_slice %131 {offsets = [0, 0], sizes = [16, 15], strides = [1, 1]} : vector<16x16xf32> to vector<16x15xf32>
    %134 = tpu.concatenate %132, %133 in 1 : vector<16x1xf32>, vector<16x15xf32> -> vector<16x16xf32>
    %135 = arith.cmpf ogt, %31, %134 : vector<16x16xf32>
    %136 = arith.andi %76, %135 : vector<16x16xi1>
    %137 = arith.ori %126, %136 : vector<16x16xi1>
    %138 = arith.andi %68, %135 : vector<16x16xi1>
    %139 = arith.ori %128, %138 : vector<16x16xi1>
    %cst_53 = arith.constant 0.000000e+00 : f32
    %140 = vector.broadcast %cst_53 : f32 to vector<1x16xf32>
    %141 = vector.extract_strided_slice %31 {offsets = [0, 0], sizes = [15, 16], strides = [1, 1]} : vector<16x16xf32> to vector<15x16xf32>
    %142 = tpu.concatenate %140, %141 in 0 : vector<1x16xf32>, vector<15x16xf32> -> vector<16x16xf32>
    %143 = arith.cmpf ogt, %31, %142 : vector<16x16xf32>
    %144 = arith.andi %78, %143 : vector<16x16xi1>
    %145 = arith.ori %137, %144 : vector<16x16xi1>
    %146 = arith.andi %70, %143 : vector<16x16xi1>
    %147 = arith.ori %139, %146 : vector<16x16xi1>
    %cst_54 = arith.constant 0.000000e+00 : f32
    %148 = vector.broadcast %cst_54 : f32 to vector<1x16xf32>
    %149 = vector.extract_strided_slice %31 {offsets = [0, 0], sizes = [15, 16], strides = [1, 1]} : vector<16x16xf32> to vector<15x16xf32>
    %150 = tpu.concatenate %148, %149 in 0 : vector<1x16xf32>, vector<15x16xf32> -> vector<16x16xf32>
    %151 = vector.extract_strided_slice %150 {offsets = [0, 1], sizes = [16, 15], strides = [1, 1]} : vector<16x16xf32> to vector<16x15xf32>
    %cst_55 = arith.constant 0.000000e+00 : f32
    %152 = vector.broadcast %cst_55 : f32 to vector<16x1xf32>
    %153 = tpu.concatenate %151, %152 in 1 : vector<16x15xf32>, vector<16x1xf32> -> vector<16x16xf32>
    %154 = arith.cmpf ogt, %31, %153 : vector<16x16xf32>
    %155 = arith.andi %80, %154 : vector<16x16xi1>
    %156 = arith.ori %145, %155 : vector<16x16xi1>
    %157 = arith.andi %72, %154 : vector<16x16xi1>
    %158 = arith.ori %147, %157 : vector<16x16xi1>
    %159 = arith.andi %156, %158 : vector<16x16xi1>
    %cst_56 = arith.constant 0.000000e+00 : f32
    %160 = vector.broadcast %cst_56 : f32 to vector<16x16xf32>
    %161 = arith.select %159, %31, %160 : vector<16x16xi1>, vector<16x16xf32>
    %c0_57 = arith.constant 0 : index
    %162 = memref.load %arg4[%c0_57] : memref<2xf32, #tpu.memory_space<smem>>
    %c1_58 = arith.constant 1 : index
    %163 = memref.load %arg4[%c1_58] : memref<2xf32, #tpu.memory_space<smem>>
    %164 = vector.broadcast %162 : f32 to vector<16x16xf32>
    %165 = arith.cmpf ogt, %161, %164 : vector<16x16xf32>
    %cst_59 = arith.constant 0.000000e+00 : f32
    %166 = vector.broadcast %cst_59 : f32 to vector<16x16xf32>
    %167 = arith.select %165, %161, %166 : vector<16x16xi1>, vector<16x16xf32>
    %168 = vector.broadcast %163 : f32 to vector<16x16xf32>
    %169 = arith.cmpf ogt, %161, %168 : vector<16x16xf32>
    %cst_60 = arith.constant 0.000000e+00 : f32
    %170 = vector.broadcast %cst_60 : f32 to vector<16x16xf32>
    %171 = arith.select %169, %161, %170 : vector<16x16xi1>, vector<16x16xf32>
    %cst_61 = arith.constant 5.000000e-01 : f32
    %172 = vector.broadcast %cst_61 : f32 to vector<16x16xf32>
    %173 = arith.mulf %167, %172 : vector<16x16xf32>
    %cst_62 = arith.constant 5.000000e-01 : f32
    %174 = vector.broadcast %cst_62 : f32 to vector<16x16xf32>
    %175 = arith.mulf %171, %174 : vector<16x16xf32>
    %176 = arith.addf %173, %175 : vector<16x16xf32>
    %c0_63 = arith.constant 0 : index
    %c0_64 = arith.constant 0 : index
    %177 = vector.load %arg6[%c0_63, %c0_64] : memref<16x16xf32, #tpu.memory_space<vmem>>, vector<16x16xf32>
    tpu.vector_store %arg6[%c0_63, %c0_64], %176 {strides = array<i32>} : memref<16x16xf32, #tpu.memory_space<vmem>>, vector<16x16xf32>,
    %c1_i32_65 = arith.constant 1 : i32
    %178 = scf.while (%arg7 = %c1_i32_65) : (i32) -> i32 {
      %c0_i32_74 = arith.constant 0 : i32
      %187 = arith.cmpi sgt, %arg7, %c0_i32_74 : i32
      scf.condition(%187) %arg7 : i32
    } do {
    ^bb0(%arg7: i32):
      %c0_74 = arith.constant 0 : index
      %c0_75 = arith.constant 0 : index
      %187 = vector.load %arg6[%c0_74, %c0_75] : memref<16x16xf32, #tpu.memory_space<vmem>>, vector<16x16xf32>
      %cst_76 = arith.constant 5.000000e-01 : f32
      %188 = vector.broadcast %cst_76 : f32 to vector<16x16xf32>
      %189 = arith.cmpf oeq, %187, %188 : vector<16x16xf32>
      %cst_77 = arith.constant 1.000000e+00 : f32
      %190 = vector.broadcast %cst_77 : f32 to vector<16x16xf32>
      %191 = arith.cmpf oeq, %187, %190 : vector<16x16xf32>
      %cst_78 = arith.constant 1.000000e+00 : f32
      %cst_79 = arith.constant 0.000000e+00 : f32
      %192 = vector.broadcast %cst_78 : f32 to vector<16x16xf32>
      %193 = vector.broadcast %cst_79 : f32 to vector<16x16xf32>
      %194 = arith.select %191, %192, %193 : vector<16x16xi1>, vector<16x16xf32>
      %cst_80 = arith.constant 0.000000e+00 : f32
      %195 = vector.broadcast %cst_80 : f32 to vector<1x16xf32>
      %196 = vector.extract_strided_slice %194 {offsets = [0, 0], sizes = [15, 16], strides = [1, 1]} : vector<16x16xf32> to vector<15x16xf32>
      %197 = tpu.concatenate %195, %196 in 0 : vector<1x16xf32>, vector<15x16xf32> -> vector<16x16xf32>
      %198 = arith.maximumf %197, %194 : vector<16x16xf32>
      %199 = vector.extract_strided_slice %194 {offsets = [1, 0], sizes = [15, 16], strides = [1, 1]} : vector<16x16xf32> to vector<15x16xf32>
      %cst_81 = arith.constant 0.000000e+00 : f32
      %200 = vector.broadcast %cst_81 : f32 to vector<1x16xf32>
      %201 = tpu.concatenate %199, %200 in 0 : vector<15x16xf32>, vector<1x16xf32> -> vector<16x16xf32>
      %202 = arith.maximumf %198, %201 : vector<16x16xf32>
      %cst_82 = arith.constant 0.000000e+00 : f32
      %203 = vector.broadcast %cst_82 : f32 to vector<16x1xf32>
      %204 = vector.extract_strided_slice %202 {offsets = [0, 0], sizes = [16, 15], strides = [1, 1]} : vector<16x16xf32> to vector<16x15xf32>
      %205 = tpu.concatenate %203, %204 in 1 : vector<16x1xf32>, vector<16x15xf32> -> vector<16x16xf32>
      %206 = arith.maximumf %205, %202 : vector<16x16xf32>
      %207 = vector.extract_strided_slice %202 {offsets = [0, 1], sizes = [16, 15], strides = [1, 1]} : vector<16x16xf32> to vector<16x15xf32>
      %cst_83 = arith.constant 0.000000e+00 : f32
      %208 = vector.broadcast %cst_83 : f32 to vector<16x1xf32>
      %209 = tpu.concatenate %207, %208 in 1 : vector<16x15xf32>, vector<16x1xf32> -> vector<16x16xf32>
      %210 = arith.maximumf %206, %209 : vector<16x16xf32>
      %cst_84 = arith.constant 5.000000e-01 : f32
      %211 = vector.broadcast %cst_84 : f32 to vector<16x16xf32>
      %212 = arith.cmpf ogt, %210, %211 : vector<16x16xf32>
      %213 = arith.andi %212, %189 : vector<16x16xi1>
      %cst_85 = arith.constant 1.000000e+00 : f32
      %cst_86 = arith.constant 0.000000e+00 : f32
      %214 = vector.broadcast %cst_85 : f32 to vector<16x16xf32>
      %215 = vector.broadcast %cst_86 : f32 to vector<16x16xf32>
      %216 = arith.select %213, %214, %215 : vector<16x16xi1>, vector<16x16xf32>
      %217 = arith.addf %216, %194 : vector<16x16xf32>
      %cst_87 = arith.constant 0.000000e+00 : f32
      %218 = vector.broadcast %cst_87 : f32 to vector<16x16xf32>
      %219 = arith.cmpf oeq, %217, %218 : vector<16x16xf32>
      %220 = arith.andi %219, %189 : vector<16x16xi1>
      %cst_88 = arith.constant 5.000000e-01 : f32
      %cst_89 = arith.constant 0.000000e+00 : f32
      %221 = vector.broadcast %cst_88 : f32 to vector<16x16xf32>
      %222 = vector.broadcast %cst_89 : f32 to vector<16x16xf32>
      %223 = arith.select %220, %221, %222 : vector<16x16xi1>, vector<16x16xf32>
      %224 = arith.addf %217, %223 : vector<16x16xf32>
      %c0_90 = arith.constant 0 : index
      %c0_91 = arith.constant 0 : index
      %225 = vector.load %arg6[%c0_90, %c0_91] : memref<16x16xf32, #tpu.memory_space<vmem>>, vector<16x16xf32>
      tpu.vector_store %arg6[%c0_90, %c0_91], %224 {strides = array<i32>} : memref<16x16xf32, #tpu.memory_space<vmem>>, vector<16x16xf32>,
      %226 = vector.shape_cast %216 : vector<16x16xf32> to vector<1x16x16xf32>
      %cst_92 = arith.constant dense<0xFF800000> : vector<1xf32>
      %227 = vector.multi_reduction <maximumf>, %226, %cst_92 [1, 2] : vector<1x16x16xf32> to vector<1xf32>
      %228 = vector.shape_cast %227 : vector<1xf32> to vector<1x1x1xf32>
      %229 = vector.extract %228[0, 0, 0] : f32 from vector<1x1x1xf32>
      %cst_93 = arith.constant 0.000000e+00 : f32
      %230 = arith.cmpf ogt, %229, %cst_93 : f32
      %231 = arith.extui %230 : i1 to i32
      scf.yield %231 : i32
    }
    %c0_66 = arith.constant 0 : index
    %c0_67 = arith.constant 0 : index
    %179 = vector.load %arg6[%c0_66, %c0_67] : memref<16x16xf32, #tpu.memory_space<vmem>>, vector<16x16xf32>
    %cst_68 = arith.constant 5.000000e-01 : f32
    %180 = vector.broadcast %cst_68 : f32 to vector<16x16xf32>
    %181 = arith.cmpf oeq, %179, %180 : vector<16x16xf32>
    %cst_69 = arith.constant 0.000000e+00 : f32
    %182 = vector.broadcast %cst_69 : f32 to vector<16x16xf32>
    %183 = arith.select %181, %182, %179 : vector<16x16xi1>, vector<16x16xf32>
    %c0_70 = arith.constant 0 : index
    %c0_71 = arith.constant 0 : index
    %c0_72 = arith.constant 0 : index
    %c0_73 = arith.constant 0 : index
    %184 = vector.load %arg5[%c0_70, %c0_71, %c0_72, %c0_73] : memref<1x1x16x16xf32, #tpu.memory_space<vmem>>, vector<1x1x16x16xf32>
    %185 = vector.shape_cast %184 : vector<1x1x16x16xf32> to vector<16x16xf32>
    %186 = vector.shape_cast %183 : vector<16x16xf32> to vector<1x1x16x16xf32>
    tpu.vector_store %arg5[%c0_70, %c0_71, %c0_72, %c0_73], %186 {strides = array<i32>} : memref<1x1x16x16xf32, #tpu.memory_space<vmem>>, vector<1x1x16x16xf32>,
    return
  }
  func.func @transform_0(%arg0: i32) -> (i32, i32, i32, i32) {
    %c0_i32 = arith.constant 0 : i32
    %c0_i32_0 = arith.constant 0 : i32
    %c0_i32_1 = arith.constant 0 : i32
    %c0_i32_2 = arith.constant 0 : i32
    return %arg0, %c0_i32, %c0_i32_0, %c0_i32_1 : i32, i32, i32, i32
  }
  func.func @transform_1(%arg0: i32) -> (i32, i32, i32) {
    %c0_i32 = arith.constant 0 : i32
    %c0_i32_0 = arith.constant 0 : i32
    %c0_i32_1 = arith.constant 0 : i32
    %c0_i32_2 = arith.constant 0 : i32
    return %c0_i32, %c0_i32_0, %c0_i32_1 : i32, i32, i32
  }
  func.func @transform_2(%arg0: i32) -> (i32, i32, i32) {
    %c0_i32 = arith.constant 0 : i32
    %c0_i32_0 = arith.constant 0 : i32
    %c0_i32_1 = arith.constant 0 : i32
    %c0_i32_2 = arith.constant 0 : i32
    return %c0_i32, %c0_i32_0, %c0_i32_1 : i32, i32, i32
  }
  func.func @transform_3(%arg0: i32) -> i32 {
    %c0_i32 = arith.constant 0 : i32
    %c0_i32_0 = arith.constant 0 : i32
    return %c0_i32 : i32
  }
  func.func @transform_4(%arg0: i32) -> (i32, i32, i32, i32) {
    %c0_i32 = arith.constant 0 : i32
    %c0_i32_0 = arith.constant 0 : i32
    %c0_i32_1 = arith.constant 0 : i32
    %c0_i32_2 = arith.constant 0 : i32
    return %arg0, %c0_i32, %c0_i32_0, %c0_i32_1 : i32, i32, i32, i32
  }
}

</mosaic_0001>

<llo_original>
// kernel: a_call__.1
$region0: #{a_call__.1}
  #allocation0 [shape = 'u32[]', space=smem, size = 0x4, offset = 0x4, fixed_abs, tag = 'smem constant byte address 0x4 - core index']
  #allocation1 [shape = 'u32[72,128]{1,0:T(1,128)}', space=vmem, size = 0x9000, scoped, tag = 'internal scratch']
  #allocation2 [shape = 'f32[16,16]{1,0:T(8,128)}', space=vmem, size = 0x2000, scoped, tag = 'scratch operand']
  %s0 = inlined_call_operand.vmem [shape: f32[2,3,16,16], index: 0, kind: input, shape index: {}]
  %s1 = inlined_call_operand.hbm [shape: f32[2,16,16], index: 1, kind: input, shape index: {}]
  %s2 = inlined_call_operand.hbm [shape: f32[2,16,16], index: 2, kind: input, shape index: {}]
  %s3 = inlined_call_operand.vmem [shape: f32[2], index: 3, kind: input, shape index: {}]
  %s4 = inlined_call_operand.hbm [shape: f32[2,1,16,16], index: 4, kind: output, shape index: {}]
  %s5 = sld [smem:[#allocation0]]
  $region68: #{a_call__.1} parent=0
    _
  %s7 = ssub.s32 1, %s5
  %s8 = scalar_select 0, %s7, %s5
  $region1: #{a_call__.1} parent=0
    #allocation3 [shape = 'u8[16384]{0}', space=vmem, size = 0x4000, scoped, tag = 'input window, operand 1, single buffered']
    #allocation4 [shape = 's32[2]{0}', space=sflag, size = 0x8, scoped, tag = 'scoped memory for a_call__.1']
    #allocation5 [shape = 's32[2]{0}', space=sflag, size = 0x8, scoped, tag = 'scoped memory for a_call__.1']
    #allocation6 [shape = 's32[2]{0}', space=sflag, size = 0x8, scoped, tag = 'scoped memory for a_call__.1']
    #allocation7 [shape = 'u8[16384]{0}', space=vmem, size = 0x4000, scoped, tag = 'input window, operand 2, single buffered']
    #allocation8 [shape = 's32[1]{0}', space=sflag, size = 0x4, scoped, tag = 'scoped memory for a_call__.1']
    #allocation9 [shape = 'u8[512]{0}', space=smem, size = 0x200, scoped, tag = 'input window, operand 3, single buffered']
    #allocation10 [shape = 'u8[16384]{0}', space=vmem, size = 0x4000, scoped, tag = 'output window, operand 0']
    %9 = vsyncpa [#allocation4], 0
    %10 = vsyncpa [#allocation8], 0
    %11 = vsyncpa [#allocation6], 0
    %12 = vsyncpa [#allocation5], 0
    %s13 = scalar_lea.sflag [#allocation5], 1
    %14 = vsyncpa %s13, 0
    loop: start=0, step=1, limit=4
    $region2: #{a_call__.1} parent=1 // loop_pre_header
      _
    $region3: #{a_call__.1} parent=1 // loop_header
      %s16 = sphi 0, %s20
      %p17 = scmp.ge.s32.totalorder %s16, 4
      %s26 = sphi 0, %s28
      %s29 = sphi 0, %s26
      %s30 = sphi 0, %s29
      %s46 = sphi 0, %s30
      %s50 = sphi 0, %s50
      %s52 = sphi 0, %s50
      %s53 = sphi 0, %s52
      %s67 = sphi 0, %s53
      %s71 = sphi 0, %s71
      %s73 = sphi 0, %s71
      %s74 = sphi 0, %s73
      %s88 = sphi 0, %s74
      %s92 = sphi 0, %s92
      %s94 = sphi 0, %s92
      %s95 = sphi 0, %s94
      %s109 = sphi 0, %s95
      %s115 = sphi 0, %s117
      %s118 = sphi 0, %s115
      %s119 = sphi 0, %s118
      %s135 = sphi 0, %s119
    $region4: #{a_call__.1} parent=1 // loop_header_branch
      %19 = sbr.rel (%p17) target = $region8
    $region5: #{a_call__.1} parent=1 // loop_body
      %s21 = ssub.s32 %s16, 1
      %s22 = ssub.s32 %s16, 2
      %s23 = sadd.s32 %s16, 1
      %s24 = ssub.s32 %s16, %s23
      %p25 = scmp.eq.s32.totalorder %s24, 0
      %s27 = sadd.s32 %s26, 1
      %s28 = scalar_select %p25, %s26, %s27
      %p31 = pneg %p25
      %p32 = scmp.eq.s32.totalorder %s16, 1
      %p33 = por %p31, %p32
      %p34 = scmp.ne.s32.totalorder %s26, %s29
      %p35 = scmp.eq.s32.totalorder %s16, 0
      %p36 = por %p34, %p35
      %p37 = scmp.ne.s32.totalorder %s26, %s29
      %p38 = scmp.eq.s32.totalorder %s21, 1
      %p39 = por %p37, %p38
      %p40 = scmp.ne.s32.totalorder %s29, %s30
      %p41 = scmp.eq.s32.totalorder %s21, 0
      %p42 = por %p40, %p41
      %p43 = scmp.ne.s32.totalorder %s29, %s30
      %p44 = scmp.eq.s32.totalorder %s22, 1
      %p45 = por %p43, %p44
      %p47 = scmp.ne.s32.totalorder %s30, %s46
      %p48 = scmp.eq.s32.totalorder %s22, 0
      %p49 = por %p47, %p48
      %s51 = sadd.s32 %s50, 1
      %p54 = scmp.eq.s32.totalorder %s16, 1
      %p55 = scmp.ne.s32.totalorder %s50, %s52
      %p56 = scmp.eq.s32.totalorder %s16, 0
      %p57 = por %p55, %p56
      %p58 = scmp.ne.s32.totalorder %s50, %s52
      %p59 = scmp.eq.s32.totalorder %s21, 1
      %p60 = por %p58, %p59
      %p61 = scmp.ne.s32.totalorder %s52, %s53
      %p62 = scmp.eq.s32.totalorder %s21, 0
      %p63 = por %p61, %p62
      %p64 = scmp.ne.s32.totalorder %s52, %s53
      %p65 = scmp.eq.s32.totalorder %s22, 1
      %p66 = por %p64, %p65
      %p68 = scmp.ne.s32.totalorder %s53, %s67
      %p69 = scmp.eq.s32.totalorder %s22, 0
      %p70 = por %p68, %p69
      %s72 = sadd.s32 %s71, 1
      %p75 = scmp.eq.s32.totalorder %s16, 1
      %p76 = scmp.ne.s32.totalorder %s71, %s73
      %p77 = scmp.eq.s32.totalorder %s16, 0
      %p78 = por %p76, %p77
      %p79 = scmp.ne.s32.totalorder %s71, %s73
      %p80 = scmp.eq.s32.totalorder %s21, 1
      %p81 = por %p79, %p80
      %p82 = scmp.ne.s32.totalorder %s73, %s74
      %p83 = scmp.eq.s32.totalorder %s21, 0
      %p84 = por %p82, %p83
      %p85 = scmp.ne.s32.totalorder %s73, %s74
      %p86 = scmp.eq.s32.totalorder %s22, 1
      %p87 = por %p85, %p86
      %p89 = scmp.ne.s32.totalorder %s74, %s88
      %p90 = scmp.eq.s32.totalorder %s22, 0
      %p91 = por %p89, %p90
      %s93 = sadd.s32 %s92, 1
      %p96 = scmp.eq.s32.totalorder %s16, 1
      %p97 = scmp.ne.s32.totalorder %s92, %s94
      %p98 = scmp.eq.s32.totalorder %s16, 0
      %p99 = por %p97, %p98
      %p100 = scmp.ne.s32.totalorder %s92, %s94
      %p101 = scmp.eq.s32.totalorder %s21, 1
      %p102 = por %p100, %p101
      %p103 = scmp.ne.s32.totalorder %s94, %s95
      %p104 = scmp.eq.s32.totalorder %s21, 0
      %p105 = por %p103, %p104
      %p106 = scmp.ne.s32.totalorder %s94, %s95
      %p107 = scmp.eq.s32.totalorder %s22, 1
      %p108 = por %p106, %p107
      %p110 = scmp.ne.s32.totalorder %s95, %s109
      %p111 = scmp.eq.s32.totalorder %s22, 0
      %p112 = por %p110, %p111
      %s113 = ssub.s32 %s16, %s23
      %p114 = scmp.eq.s32.totalorder %s113, 0
      %s116 = sadd.s32 %s115, 1
      %s117 = scalar_select %p114, %s115, %s116
      %p120 = pneg %p114
      %p121 = scmp.eq.s32.totalorder %s16, 1
      %p122 = por %p120, %p121
      %p123 = scmp.ne.s32.totalorder %s115, %s118
      %p124 = scmp.eq.s32.totalorder %s16, 0
      %p125 = por %p123, %p124
      %p126 = scmp.ne.s32.totalorder %s115, %s118
      %p127 = scmp.eq.s32.totalorder %s21, 1
      %p128 = por %p126, %p127
      %p129 = scmp.ne.s32.totalorder %s118, %s119
      %p130 = scmp.eq.s32.totalorder %s21, 0
      %p131 = por %p129, %p130
      %p132 = scmp.ne.s32.totalorder %s118, %s119
      %p133 = scmp.eq.s32.totalorder %s22, 1
      %p134 = por %p132, %p133
      %p136 = scmp.ne.s32.totalorder %s119, %s135
      %p137 = scmp.eq.s32.totalorder %s22, 0
      %p138 = por %p136, %p137
      %p139 = scmp.le.s32.totalorder 1, %s16
      %p140 = scmp.lt.s32.totalorder %s16, 3
      %p141 = pnand %p139, %p140
      %p142 = pneg %p141
      // Predicated region
      $region9: #{a_call__.1} parent=5 // pred_check
        _
      $region10: #{a_call__.1} parent=5 // pred_check_branch
        %144 = sbr.rel (%p141) target = $region12
      $region11: #{a_call__.1} parent=5 // pred_region
        %s145 = ssub.s32 %s16, 1
        // Predicated region
        $region13: #{a_call__.1} parent=11 // pred_check
          %p146 = pneg %p63
        $region14: #{a_call__.1} parent=11 // pred_check_branch
          %148 = sbr.rel (%p146) target = $region16
        $region15: #{a_call__.1} parent=11 // pred_region
          %150 = vsyncadd [#allocation4], 0
          %s151 = sshll.u32 %s1, 4
          %s152 = int_to_ptr.hbm [resolvable:$true] %s151
          %s153 = sshll.u32 [#allocation3], 4
          %s154 = int_to_ptr.vmem [resolvable:$true] %s153
          %159 = dma.hbm_to_vmem [thread:$0]  %s152, 512, %s154, [#allocation4], 128, 128, 8
        $region16: #{a_call__.1} parent=11 // pred_fallthru
          _
        // Predicated region
        $region17: #{a_call__.1} parent=11 // pred_check
          %p160 = pneg %p84
        $region18: #{a_call__.1} parent=11 // pred_check_branch
          %162 = sbr.rel (%p160) target = $region20
        $region19: #{a_call__.1} parent=11 // pred_region
          %164 = vsyncadd [#allocation8], 0
          %s165 = sshll.u32 %s2, 4
          %s166 = int_to_ptr.hbm [resolvable:$true] %s165
          %s167 = sshll.u32 [#allocation7], 4
          %s168 = int_to_ptr.vmem [resolvable:$true] %s167
          %173 = dma.hbm_to_vmem [thread:$0]  %s166, 512, %s168, [#allocation8], 128, 128, 8
        $region20: #{a_call__.1} parent=11 // pred_fallthru
          _
        // Predicated region
        $region21: #{a_call__.1} parent=11 // pred_check
          %p174 = pneg %p105
        $region22: #{a_call__.1} parent=11 // pred_check_branch
          %176 = sbr.rel (%p174) target = $region24
        $region23: #{a_call__.1} parent=11 // pred_region
          %178 = vsyncadd [#allocation6], 0
          %s180 = sshll.u32 %s3, 4
          %s181 = int_to_ptr.vmem [resolvable:$true] %s180
          %183 = dma.vmem_to_smem %s181, 16, [#allocation9], [#allocation6]
        $region24: #{a_call__.1} parent=11 // pred_fallthru
          _
      $region12: #{a_call__.1} parent=5 // pred_fallthru
        _
      %p184 = scmp.lt.s32.totalorder %s16, 2
      // Predicated region
      $region25: #{a_call__.1} parent=5 // pred_check
        %p185 = pneg %p184
      $region26: #{a_call__.1} parent=5 // pred_check_branch
        %187 = sbr.rel (%p185) target = $region28
      $region27: #{a_call__.1} parent=5 // pred_region
        // Predicated region
        $region29: #{a_call__.1} parent=27 // pred_check
          %p188 = pneg %p36
        $region30: #{a_call__.1} parent=27 // pred_check_branch
          %190 = sbr.rel (%p188) target = $region32
        $region31: #{a_call__.1} parent=27 // pred_region
          %p191 = scmp.lt.s32.totalorder %s16, 1
          %s192 = scalar_select %p191, %s16, 1
          %s193 = smul.addr %s192, 6
          %s194 = smul.addr %s193, 8
          %s195 = scalar_lea.vmem %s0, %s194
        $region32: #{a_call__.1} parent=27 // pred_fallthru
          _
      $region28: #{a_call__.1} parent=5 // pred_fallthru
        _
      %p196 = scmp.le.s32.totalorder 1, %s16
      %p197 = scmp.lt.s32.totalorder %s16, 3
      %p198 = pnand %p196, %p197
      %p199 = pneg %p198
      // Predicated region
      $region33: #{a_call__.1} parent=5 // pred_check
        _
      $region34: #{a_call__.1} parent=5 // pred_check_branch
        %201 = sbr.rel (%p198) target = $region36
      $region35: #{a_call__.1} parent=5 // pred_region
        %s202 = ssub.s32 %s16, 1
        // Predicated region
        $region37: #{a_call__.1} parent=35 // pred_check
          %p203 = pneg %p63
        $region38: #{a_call__.1} parent=35 // pred_check_branch
          %205 = sbr.rel (%p203) target = $region40
        $region39: #{a_call__.1} parent=35 // pred_region
          %207 = dma.done [#allocation4], 512
        $region40: #{a_call__.1} parent=35 // pred_fallthru
          _
        // Predicated region
        $region41: #{a_call__.1} parent=35 // pred_check
          %p208 = pneg %p84
        $region42: #{a_call__.1} parent=35 // pred_check_branch
          %210 = sbr.rel (%p208) target = $region44
        $region43: #{a_call__.1} parent=35 // pred_region
          %212 = dma.done [#allocation8], 512
        $region44: #{a_call__.1} parent=35 // pred_fallthru
          _
        // Predicated region
        $region45: #{a_call__.1} parent=35 // pred_check
          %p213 = pneg %p105
        $region46: #{a_call__.1} parent=35 // pred_check_branch
          %215 = sbr.rel (%p213) target = $region48
        $region47: #{a_call__.1} parent=35 // pred_region
          %217 = dma.done [#allocation6], 16
        $region48: #{a_call__.1} parent=35 // pred_fallthru
          _
        %218 = sfence
        %p219 = scmp.lt.s32.totalorder %s21, 1
        %s220 = scalar_select %p219, %s21, 1
        %s221 = smul.addr %s220, 6
        %s222 = smul.addr %s221, 8
        %s223 = scalar_lea.vmem %s0, %s222
        %p224 = pneg %p42
        %p225 = pneg %p39
        %p226 = pneg %p63
        %p227 = pneg %p60
        %p228 = pneg %p84
        %p229 = pneg %p81
        %p230 = pneg %p105
        %p231 = pneg %p102
        %p232 = pneg %p131
        %p233 = pneg %p128
        %s234 = sand.u32 %s118, 1
        %s235 = scalar_lea.sflag [#allocation5], %s234
        %s236 = sand.u32 %s118, 1
        %s237 = smul.addr %s236, 16
        %s238 = scalar_lea.vmem [#allocation10], %s237
        %p239 = scmp.lt.s32.totalorder %s21, 1
        %s240 = scalar_select %p239, %s21, 1
        %s241 = smul.addr %s240, 6
        %s242 = smul.addr %s241, 8
        %s243 = scalar_lea.vmem %s0, %s242
        %v244 = vld [vmem:[%s243] sm:$0xff]
        %v245 = vld [vmem:[%s243 + $0x8] sm:$0xff]
        %v246 = vmul.f32 %v244, 0.299
        %v247 = vmul.f32 %v245, 0.299
        %s248 = scalar_lea.vmem %s243, 16
        %v249 = vld [vmem:[%s248] sm:$0xff]
        %v250 = vld [vmem:[%s248 + $0x8] sm:$0xff]
        %v251 = vmul.f32 %v249, 0.587
        %v252 = vmul.f32 %v250, 0.587
        %v253 = vadd.f32 %v246, %v251
        %v254 = vadd.f32 %v247, %v252
        %s255 = scalar_lea.vmem %s243, 32
        %v256 = vld [vmem:[%s255] sm:$0xff]
        %v257 = vld [vmem:[%s255 + $0x8] sm:$0xff]
        %v258 = vmul.f32 %v256, 0.114
        %v259 = vmul.f32 %v257, 0.114
        %v260 = vadd.f32 %v253, %v258
        %v261 = vadd.f32 %v254, %v259
        %v262 = vld [vmem:[#allocation3] sm:$0xff]
        %v263 = vld [vmem:[#allocation3 + $0x8] sm:$0xff]
        %vm264 = vcmask 130048
        %v266 = vsel %vm264, %v262, 0
        %v269 = vsel %vm264, %v263, 0
        %271 = vmatpush.msra.mxu0 0.0
        %272 = vmatpush.msra.mxu0 0.0
        %273 = vmatpush.msra.mxu0 0.0
        %274 = vmatpush.msra.mxu0 0.0
        %275 = vmatpush.msra.mxu0 0.0
        %276 = vmatpush.msra.mxu0 0.0
        %277 = vmatpush.msra.mxu0 0.0
        %278 = vmatpush.msra.mxu0 0.0
        %279 = vmatpush.msra.mxu0 0.0
        %280 = vmatpush.msra.mxu0 0.0
        %281 = vmatpush.msra.mxu0 0.0
        %282 = vmatpush.msra.mxu0 0.0
        %283 = vmatpush.msra.mxu0 0.0
        %284 = vmatpush.msra.mxu0 0.0
        %285 = vmatpush.msra.mxu0 %v261
        %286 = vmatpush.msra.mxu0 %v260
        %287 = vmatmul.f32.gmra.mxu0 %v266
        %v288 = vpop.f32.mrf.mxu0
        %v289 = vadd.f32 0.0, %v288
        %290 = vmatmul.f32.gmra.mxu0 %v269
        %v291 = vpop.f32.mrf.mxu0
        %v292 = vadd.f32 0.0, %v291
        %293 = vdwg.mxu0
        %v294 = vld [vmem:[#allocation7] sm:$0xff]
        %v295 = vld [vmem:[#allocation7 + $0x8] sm:$0xff]
        %v297 = vsel %vm264, %v289, 0
        %v300 = vsel %vm264, %v292, 0
        %302 = vmatpush.msra.mxu0 0.0
        %303 = vmatpush.msra.mxu0 0.0
        %304 = vmatpush.msra.mxu0 0.0
        %305 = vmatpush.msra.mxu0 0.0
        %306 = vmatpush.msra.mxu0 0.0
        %307 = vmatpush.msra.mxu0 0.0
        %308 = vmatpush.msra.mxu0 0.0
        %309 = vmatpush.msra.mxu0 0.0
        %310 = vmatpush.msra.mxu0 0.0
        %311 = vmatpush.msra.mxu0 0.0
        %312 = vmatpush.msra.mxu0 0.0
        %313 = vmatpush.msra.mxu0 0.0
        %314 = vmatpush.msra.mxu0 0.0
        %315 = vmatpush.msra.mxu0 0.0
        %316 = vmatpush.msra.mxu0 %v295
        %317 = vmatpush.msra.mxu0 %v294
        %318 = vmatmul.f32.gmra.mxu0 %v297
        %v319 = vpop.f32.mrf.mxu0
        %v320 = vadd.f32 0.0, %v319
        %321 = vmatmul.f32.gmra.mxu0 %v300
        %v322 = vpop.f32.mrf.mxu0
        %v323 = vadd.f32 0.0, %v322
        %324 = vdwg.mxu0
        %s325 = scalar_lea.vmem [#allocation3], 16
        %v326 = vld [vmem:[%s325] sm:$0xff]
        %v327 = vld [vmem:[%s325 + $0x8] sm:$0xff]
        %v329 = vsel %vm264, %v326, 0
        %v332 = vsel %vm264, %v327, 0
        %334 = vmatpush.msra.mxu0 0.0
        %335 = vmatpush.msra.mxu0 0.0
        %336 = vmatpush.msra.mxu0 0.0
        %337 = vmatpush.msra.mxu0 0.0
        %338 = vmatpush.msra.mxu0 0.0
        %339 = vmatpush.msra.mxu0 0.0
        %340 = vmatpush.msra.mxu0 0.0
        %341 = vmatpush.msra.mxu0 0.0
        %342 = vmatpush.msra.mxu0 0.0
        %343 = vmatpush.msra.mxu0 0.0
        %344 = vmatpush.msra.mxu0 0.0
        %345 = vmatpush.msra.mxu0 0.0
        %346 = vmatpush.msra.mxu0 0.0
        %347 = vmatpush.msra.mxu0 0.0
        %348 = vmatpush.msra.mxu0 %v261
        %349 = vmatpush.msra.mxu0 %v260
        %350 = vmatmul.f32.gmra.mxu0 %v329
        %v351 = vpop.f32.mrf.mxu0
        %v352 = vadd.f32 0.0, %v351
        %353 = vmatmul.f32.gmra.mxu0 %v332
        %v354 = vpop.f32.mrf.mxu0
        %v355 = vadd.f32 0.0, %v354
        %356 = vdwg.mxu0
        %s357 = scalar_lea.vmem [#allocation7], 16
        %v358 = vld [vmem:[%s357] sm:$0xff]
        %v359 = vld [vmem:[%s357 + $0x8] sm:$0xff]
        %v361 = vsel %vm264, %v352, 0
        %v364 = vsel %vm264, %v355, 0
        %366 = vmatpush.msra.mxu0 0.0
        %367 = vmatpush.msra.mxu0 0.0
        %368 = vmatpush.msra.mxu0 0.0
        %369 = vmatpush.msra.mxu0 0.0
        %370 = vmatpush.msra.mxu0 0.0
        %371 = vmatpush.msra.mxu0 0.0
        %372 = vmatpush.msra.mxu0 0.0
        %373 = vmatpush.msra.mxu0 0.0
        %374 = vmatpush.msra.mxu0 0.0
        %375 = vmatpush.msra.mxu0 0.0
        %376 = vmatpush.msra.mxu0 0.0
        %377 = vmatpush.msra.mxu0 0.0
        %378 = vmatpush.msra.mxu0 0.0
        %379 = vmatpush.msra.mxu0 0.0
        %380 = vmatpush.msra.mxu0 %v359
        %381 = vmatpush.msra.mxu0 %v358
        %382 = vmatmul.f32.gmra.mxu0 %v361
        %v383 = vpop.f32.mrf.mxu0
        %v384 = vadd.f32 0.0, %v383
        %385 = vmatmul.f32.gmra.mxu0 %v364
        %v386 = vpop.f32.mrf.mxu0
        %v387 = vadd.f32 0.0, %v386
        %388 = vdwg.mxu0
        %v389 = vmul.f32 %v320, %v320
        %v390 = vmul.f32 %v323, %v323
        %v391 = vmul.f32 %v384, %v384
        %v392 = vmul.f32 %v387, %v387
        %v393 = vadd.f32 %v389, %v391
        %v394 = vadd.f32 %v390, %v392
        %v395 = vadd.f32 %v393, 1e-06
        %v396 = vadd.f32 %v394, 1e-06
        %v397 = vrsqrt.pop %v395
        %v398 = vmul.f32 %v397, %v395
        %v399 = vmul.f32 %v398, %v397
        %v400 = vmul.f32 0.5, %v399
        %v401 = vsub.f32 1.5, %v400
        %v402 = vmul.f32 %v397, %v401
        %v403 = vmul.f32 %v395, %v402
        %vm404 = vcmp.eq.f32.partialorder %v395, inf
        %v405 = vsel %vm404, %v395, %v403
        %vm406 = vcmp.eq.f32.partialorder %v395, 0.0
        %v407 = vand.u32 %v395, 2147483648
        %v408 = vsel %vm406, %v407, %v405
        %v409 = vrsqrt.pop %v396
        %v410 = vmul.f32 %v409, %v396
        %v411 = vmul.f32 %v410, %v409
        %v412 = vmul.f32 0.5, %v411
        %v413 = vsub.f32 1.5, %v412
        %v414 = vmul.f32 %v409, %v413
        %v415 = vmul.f32 %v396, %v414
        %vm416 = vcmp.eq.f32.partialorder %v396, inf
        %v417 = vsel %vm416, %v396, %v415
        %vm418 = vcmp.eq.f32.partialorder %v396, 0.0
        %v419 = vand.u32 %v396, 2147483648
        %v420 = vsel %vm418, %v419, %v417
        %v421 = vand.u32 2147483647, %v320
        %v422 = vand.u32 2147483647, %v323
        %v423 = vand.u32 2147483647, %v384
        %v424 = vand.u32 2147483647, %v387
        %v425 = vmul.f32 %v421, 0.41421357
        %v426 = vmul.f32 %v422, 0.41421357
        %vm427 = vcmp.le.f32.partialorder %v423, %v425
        %vm428 = vcmp.le.f32.partialorder %v424, %v426
        %v429 = vmul.f32 %v423, 0.41421357
        %v430 = vmul.f32 %v424, 0.41421357
        %vm431 = vcmp.le.f32.partialorder %v421, %v429
        %vm432 = vcmp.le.f32.partialorder %v422, %v430
        %vm433 = vcmp.gt.f32.partialorder %v320, 0.0
        %vm434 = vcmp.gt.f32.partialorder %v323, 0.0
        %vm435 = vcmp.gt.f32.partialorder %v384, 0.0
        %vm436 = vcmp.gt.f32.partialorder %v387, 0.0
        %v437 = vsel %vm435, 1, 7
        %v438 = vsel %vm436, 1, 7
        %v439 = vsel %vm435, 3, 5
        %v440 = vsel %vm436, 3, 5
        %v441 = vsel %vm433, %v437, %v439
        %v442 = vsel %vm434, %v438, %v440
        %vm443 = vcmp.ge.f32.partialorder %v320, 0.0
        %vm444 = vcmp.ge.f32.partialorder %v323, 0.0
        %v445 = vsel %vm443, 0, 4
        %v446 = vsel %vm444, 0, 4
        %v447 = vsel %vm435, 2, 6
        %v448 = vsel %vm436, 2, 6
        %v449 = vsel %vm431, %v447, %v441
        %v450 = vsel %vm432, %v448, %v442
        %v451 = vsel %vm427, %v445, %v449
        %v452 = vsel %vm428, %v446, %v450
        %vm453 = vcmp.eq.s32.totalorder %v451, 0
        %vm454 = vcmp.eq.s32.totalorder %v452, 0
        %vm455 = vcmp.eq.s32.totalorder %v451, 1
        %vm456 = vcmp.eq.s32.totalorder %v452, 1
        %vm457 = vcmp.eq.s32.totalorder %v451, 2
        %vm458 = vcmp.eq.s32.totalorder %v452, 2
        %vm459 = vcmp.eq.s32.totalorder %v451, 3
        %vm460 = vcmp.eq.s32.totalorder %v452, 3
        %vm461 = vcmp.eq.s32.totalorder %v451, 4
        %vm462 = vcmp.eq.s32.totalorder %v452, 4
        %vm463 = vcmp.eq.s32.totalorder %v451, 5
        %vm464 = vcmp.eq.s32.totalorder %v452, 5
        %vm465 = vcmp.eq.s32.totalorder %v451, 6
        %vm466 = vcmp.eq.s32.totalorder %v452, 6
        %vm467 = vcmp.eq.s32.totalorder %v451, 7
        %vm468 = vcmp.eq.s32.totalorder %v452, 7
        %471 = vrot.lane.b32.xlu0 %v408, 127
        %v472 = vpop.permute.xlu0 %471
        %473 = vrot.lane.b32.xlu0 %v420, 127
        %v474 = vpop.permute.xlu0 %473
        %vm477 = vcmask 121856
        %v478 = vsel %vm477, %v472, 0.0
        %v479 = vsel %vm477, %v474, 0.0
        %vm480 = vcmp.gt.f32.partialorder %v408, %v478
        %vm481 = vcmp.gt.f32.partialorder %v420, %v479
        %vm482 = vmand %vm453, %vm480
        %vm483 = vmand %vm454, %vm481
        %vm484 = vmand %vm461, %vm480
        %vm485 = vmand %vm462, %vm481
        %vm486 = vcmask 1046528
        %v487 = vrot.slane %v408, 1
        %v488 = vrot.slane %v420, 1
        %v489 = vsel %vm486, %v487, %v488
        %v492 = vsel %vm486, %v488, 0.0
        %494 = vrot.lane.b32.xlu0 %v489, 127
        %v495 = vpop.permute.xlu0 %494
        %496 = vrot.lane.b32.xlu0 %v492, 127
        %v497 = vpop.permute.xlu0 %496
        %v500 = vsel %vm477, %v495, 0.0
        %v501 = vsel %vm477, %v497, 0.0
        %vm502 = vcmp.gt.f32.partialorder %v408, %v500
        %vm503 = vcmp.gt.f32.partialorder %v420, %v501
        %vm504 = vmand %vm455, %vm502
        %vm505 = vmand %vm456, %vm503
        %vm506 = vmor %vm482, %vm504
        %vm507 = vmor %vm483, %vm505
        %vm508 = vmand %vm463, %vm502
        %vm509 = vmand %vm464, %vm503
        %vm510 = vmor %vm484, %vm508
        %vm511 = vmor %vm485, %vm509
        %vm512 = vcmp.gt.f32.partialorder %v408, %v489
        %vm513 = vcmp.gt.f32.partialorder %v420, %v492
        %vm514 = vmand %vm457, %vm512
        %vm515 = vmand %vm458, %vm513
        %vm516 = vmor %vm506, %vm514
        %vm517 = vmor %vm507, %vm515
        %vm518 = vmand %vm465, %vm512
        %vm519 = vmand %vm466, %vm513
        %vm520 = vmor %vm510, %vm518
        %vm521 = vmor %vm511, %vm519
        %522 = vrot.lane.b32.xlu0 %v489, 1
        %v523 = vpop.permute.xlu0 %522
        %524 = vrot.lane.b32.xlu0 %v492, 1
        %v525 = vpop.permute.xlu0 %524
        %vm528 = vcmask 7168
        %v529 = vsel %vm528, 0.0, %v523
        %v530 = vsel %vm528, 0.0, %v525
        %vm531 = vcmp.gt.f32.partialorder %v408, %v529
        %vm532 = vcmp.gt.f32.partialorder %v420, %v530
        %vm533 = vmand %vm459, %vm531
        %vm534 = vmand %vm460, %vm532
        %vm535 = vmor %vm516, %vm533
        %vm536 = vmor %vm517, %vm534
        %vm537 = vmand %vm467, %vm531
        %vm538 = vmand %vm468, %vm532
        %vm539 = vmor %vm520, %vm537
        %vm540 = vmor %vm521, %vm538
        %541 = vrot.lane.b32.xlu0 %v408, 1
        %v542 = vpop.permute.xlu0 %541
        %543 = vrot.lane.b32.xlu0 %v420, 1
        %v544 = vpop.permute.xlu0 %543
        %v547 = vsel %vm528, 0.0, %v542
        %v548 = vsel %vm528, 0.0, %v544
        %vm549 = vcmp.gt.f32.partialorder %v408, %v547
        %vm550 = vcmp.gt.f32.partialorder %v420, %v548
        %vm551 = vmand %vm461, %vm549
        %vm552 = vmand %vm462, %vm550
        %vm553 = vmor %vm535, %vm551
        %vm554 = vmor %vm536, %vm552
        %vm555 = vmand %vm453, %vm549
        %vm556 = vmand %vm454, %vm550
        %vm557 = vmor %vm539, %vm555
        %vm558 = vmor %vm540, %vm556
        %vm559 = vcmask 1040384
        %v560 = vrot.slane %v408, 7
        %v561 = vrot.slane %v420, 7
        %v562 = vsel %vm559, %v560, %v561
        %v565 = vsel %vm559, 0.0, %v560
        %567 = vrot.lane.b32.xlu0 %v565, 1
        %v568 = vpop.permute.xlu0 %567
        %569 = vrot.lane.b32.xlu0 %v562, 1
        %v570 = vpop.permute.xlu0 %569
        %v573 = vsel %vm528, 0.0, %v568
        %v574 = vsel %vm528, 0.0, %v570
        %vm575 = vcmp.gt.f32.partialorder %v408, %v573
        %vm576 = vcmp.gt.f32.partialorder %v420, %v574
        %vm577 = vmand %vm463, %vm575
        %vm578 = vmand %vm464, %vm576
        %vm579 = vmor %vm553, %vm577
        %vm580 = vmor %vm554, %vm578
        %vm581 = vmand %vm455, %vm575
        %vm582 = vmand %vm456, %vm576
        %vm583 = vmor %vm557, %vm581
        %vm584 = vmor %vm558, %vm582
        %vm585 = vcmp.gt.f32.partialorder %v408, %v565
        %vm586 = vcmp.gt.f32.partialorder %v420, %v562
        %vm587 = vmand %vm465, %vm585
        %vm588 = vmand %vm466, %vm586
        %vm589 = vmor %vm579, %vm587
        %vm590 = vmor %vm580, %vm588
        %vm591 = vmand %vm457, %vm585
        %vm592 = vmand %vm458, %vm586
        %vm593 = vmor %vm583, %vm591
        %vm594 = vmor %vm584, %vm592
        %595 = vrot.lane.b32.xlu0 %v565, 127
        %v596 = vpop.permute.xlu0 %595
        %597 = vrot.lane.b32.xlu0 %v562, 127
        %v598 = vpop.permute.xlu0 %597
        %v601 = vsel %vm477, %v596, 0.0
        %v602 = vsel %vm477, %v598, 0.0
        %vm603 = vcmp.gt.f32.partialorder %v408, %v601
        %vm604 = vcmp.gt.f32.partialorder %v420, %v602
        %vm605 = vmand %vm467, %vm603
        %vm606 = vmand %vm468, %vm604
        %vm607 = vmor %vm589, %vm605
        %vm608 = vmor %vm590, %vm606
        %vm609 = vmand %vm459, %vm603
        %vm610 = vmand %vm460, %vm604
        %vm611 = vmor %vm593, %vm609
        %vm612 = vmor %vm594, %vm610
        %vm613 = vmand %vm607, %vm611
        %vm614 = vmand %vm608, %vm612
        %v615 = vsel %vm613, %v408, 0.0
        %v616 = vsel %vm614, %v420, 0.0
        %s617 = sld [smem:[#allocation9]]
        %s618 = sld [smem:[#allocation9 + $0x1]]
        %v619 = vstv %s617
        %vm620 = vcmp.gt.f32.partialorder %v615, %v619
        %vm621 = vcmp.gt.f32.partialorder %v616, %v619
        %v622 = vsel %vm620, %v615, 0.0
        %v623 = vsel %vm621, %v616, 0.0
        %v624 = vstv %s618
        %vm625 = vcmp.gt.f32.partialorder %v615, %v624
        %vm626 = vcmp.gt.f32.partialorder %v616, %v624
        %v627 = vsel %vm625, %v615, 0.0
        %v628 = vsel %vm626, %v616, 0.0
        %v629 = vmul.f32 %v622, 0.5
        %v630 = vmul.f32 %v623, 0.5
        %v631 = vmul.f32 %v627, 0.5
        %v632 = vmul.f32 %v628, 0.5
        %v633 = vadd.f32 %v629, %v631
        %v634 = vadd.f32 %v630, %v632
        %635 = vst.msk [vmem:[#allocation2] sm:$0xff] %vm264, %v633
        %636 = vst.msk [vmem:[#allocation2 + $0x8] sm:$0xff] %vm264, %v634
        // While loop
        $region49: #{a_call__.1} parent=35 // loop_pre_header
          _
        $region50: #{a_call__.1} parent=35 // loop_header
          %s638 = sphi 1, %s722
          %p639 = scmp.gt.s32.totalorder %s638, 0
          %p640 = pneg %p639
        $region51: #{a_call__.1} parent=35 // loop_header_branch
          %642 = sbr.rel (%p640) target = $region55
        $region52: #{a_call__.1} parent=35 // loop_body
          %v643 = vld [vmem:[#allocation2] sm:$0xff]
          %v644 = vld [vmem:[#allocation2 + $0x8] sm:$0xff]
          %vm645 = vcmp.eq.f32.partialorder %v643, 0.5
          %vm646 = vcmp.eq.f32.partialorder %v644, 0.5
          %vm647 = vcmp.eq.f32.partialorder %v643, 1.0
          %vm648 = vcmp.eq.f32.partialorder %v644, 1.0
          %v649 = vsel %vm647, 1.0, 0.0
          %v650 = vsel %vm648, 1.0, 0.0
          %v653 = vrot.slane %v649, 7
          %v654 = vrot.slane %v650, 7
          %v655 = vsel %vm559, %v653, %v654
          %v658 = vsel %vm559, 0.0, %v653
          %v659 = vmax.f32 %v658, %v649
          %v660 = vmax.f32 %v655, %v650
          %v661 = vrot.slane %v649, 1
          %v662 = vrot.slane %v650, 1
          %v663 = vsel %vm486, %v661, %v662
          %v666 = vsel %vm486, %v662, 0.0
          %v667 = vmax.f32 %v659, %v663
          %v668 = vmax.f32 %v660, %v666
          %671 = vrot.lane.b32.xlu0 %v667, 1
          %v672 = vpop.permute.xlu0 %671
          %673 = vrot.lane.b32.xlu0 %v668, 1
          %v674 = vpop.permute.xlu0 %673
          %v677 = vsel %vm528, 0.0, %v672
          %v678 = vsel %vm528, 0.0, %v674
          %v679 = vmax.f32 %v677, %v667
          %v680 = vmax.f32 %v678, %v668
          %681 = vrot.lane.b32.xlu0 %v667, 127
          %v682 = vpop.permute.xlu0 %681
          %683 = vrot.lane.b32.xlu0 %v668, 127
          %v684 = vpop.permute.xlu0 %683
          %v687 = vsel %vm477, %v682, 0.0
          %v688 = vsel %vm477, %v684, 0.0
          %v689 = vmax.f32 %v679, %v687
          %v690 = vmax.f32 %v680, %v688
          %vm691 = vcmp.gt.f32.partialorder %v689, 0.5
          %vm692 = vcmp.gt.f32.partialorder %v690, 0.5
          %vm693 = vmand %vm691, %vm645
          %vm694 = vmand %vm692, %vm646
          %v695 = vsel %vm693, 1.0, 0.0
          %v696 = vsel %vm694, 1.0, 0.0
          %v697 = vadd.f32 %v695, %v649
          %v698 = vadd.f32 %v696, %v650
          %vm699 = vcmp.eq.f32.partialorder %v697, 0.0
          %vm700 = vcmp.eq.f32.partialorder %v698, 0.0
          %vm701 = vmand %vm699, %vm645
          %vm702 = vmand %vm700, %vm646
          %v703 = vsel %vm701, 0.5, 0.0
          %v704 = vsel %vm702, 0.5, 0.0
          %v705 = vadd.f32 %v697, %v703
          %v706 = vadd.f32 %v698, %v704
          %707 = vst.msk [vmem:[#allocation2] sm:$0xff] %vm264, %v705
          %708 = vst.msk [vmem:[#allocation2 + $0x8] sm:$0xff] %vm264, %v706
          %v709 = vsel %vm264, %v695, -inf
          %v710 = vsel %vm264, %v696, -inf
          %v711 = vmax.f32 %v709, %v710
          %712 = vmax.xlane.f32.xlu0 %v711
          %v713 = vpop.xlane.xlu0 %712
          %v714 = vrot.slane %v713, 4
          %v715 = vmax.f32 %v713, %v714
          %v716 = vrot.slane %v715, 2
          %v717 = vmax.f32 %v715, %v716
          %v718 = vrot.slane %v717, 1
          %v719 = vmax.f32 %v717, %v718
          %s720 = vtos %v719
          %p721 = scmp.gt.f32.partialorder %s720, 0.0
          %s722 = scalar_select %p721, 1, 0
        $region53: #{a_call__.1} parent=35 // loop_footer
          _
        $region54: #{a_call__.1} parent=35 // loop_footer_branch
          %637 = sbr.rel target = $region50
        $region55: #{a_call__.1} parent=35 // loop_exit
          _
        %v723 = vld [vmem:[#allocation2] sm:$0xff]
        %v724 = vld [vmem:[#allocation2 + $0x8] sm:$0xff]
        %vm725 = vcmp.eq.f32.partialorder %v723, 0.5
        %vm726 = vcmp.eq.f32.partialorder %v724, 0.5
        %v727 = vsel %vm725, 0.0, %v723
        %v728 = vsel %vm726, 0.0, %v724
        %729 = vst.msk [vmem:[%s238] sm:$0xff] %vm264, %v727
        %730 = vst.msk [vmem:[%s238 + $0x8] sm:$0xff] %vm264, %v728
        %s731 = sand.u32 %s118, 1
        %s732 = scalar_lea.sflag [#allocation5], %s731
        %s733 = sand.u32 %s118, 1
        %s734 = smul.addr %s733, 16
        %s735 = scalar_lea.vmem [#allocation10], %s734
        // Predicated region
        $region56: #{a_call__.1} parent=35 // pred_check
          %p736 = pneg %p128
        $region57: #{a_call__.1} parent=35 // pred_check_branch
          %738 = sbr.rel (%p736) target = $region59
        $region58: #{a_call__.1} parent=35 // pred_region
          %740 = vsyncadd %s732, 0
          %s741 = smul.addr %s21, 2
          %s742 = smul.addr %s741, 8
          %s743 = scalar_lea.hbm %s4, %s742
          %s744 = sshll.u32 %s735, 4
          %s745 = int_to_ptr.vmem [resolvable:$true] %s744
          %s746 = sshll.u32 %s743, 4
          %s747 = int_to_ptr.hbm [resolvable:$true] %s746
          %752 = dma.vmem_to_hbm [thread:$0]  %s745, 256, %s747, %s732, 128, 128, 8
        $region59: #{a_call__.1} parent=35 // pred_fallthru
          _
      $region36: #{a_call__.1} parent=5 // pred_fallthru
        _
      %p753 = scmp.le.s32.totalorder 2, %s16
      // Predicated region
      $region60: #{a_call__.1} parent=5 // pred_check
        %p754 = pneg %p753
      $region61: #{a_call__.1} parent=5 // pred_check_branch
        %756 = sbr.rel (%p754) target = $region63
      $region62: #{a_call__.1} parent=5 // pred_region
        %s757 = ssub.s32 %s16, 2
        // Predicated region
        $region64: #{a_call__.1} parent=62 // pred_check
          %p758 = pneg %p134
        $region65: #{a_call__.1} parent=62 // pred_check_branch
          %760 = sbr.rel (%p758) target = $region67
        $region66: #{a_call__.1} parent=62 // pred_region
          %s761 = sand.u32 %s119, 1
          %s762 = scalar_lea.sflag [#allocation5], %s761
          %s763 = sand.u32 %s119, 1
          %s764 = smul.addr %s763, 16
          %s765 = scalar_lea.vmem [#allocation10], %s764
          %767 = dma.done %s762, 256
        $region67: #{a_call__.1} parent=62 // pred_fallthru
          _
      $region63: #{a_call__.1} parent=5 // pred_fallthru
        _
    $region6: #{a_call__.1} parent=1 // loop_footer
      %s20 = sadd.s32 1, %s16
    $region7: #{a_call__.1} parent=1 // loop_footer_branch
      %15 = sbr.rel target = $region3
    $region8: #{a_call__.1} parent=1 // loop_exit
      _
    %768 = vsyncpa [#allocation4], 1
    %s769 = scalar_lea.sflag [#allocation4], 1
    %770 = vsyncpa %s769, 1
    %771 = vsyncpa [#allocation8], 1
    %772 = vsyncpa [#allocation5], 1
    %s773 = scalar_lea.sflag [#allocation5], 1
    %774 = vsyncpa %s773, 1
    %775 = vsyncpa [#allocation6], 1
    %s776 = scalar_lea.sflag [#allocation6], 1
    %777 = vsyncpa %s776, 1

</llo_original>
